<compile_context>
chip_gen: v6e
topology: v6e:2x2x1
jax: 0.10.0
libtpu: 0.0.40
codegen_flags: <defaults>
</compile_context>

<pallas_src>
import jax
import jax.numpy as jnp
from jax.experimental import pallas as pl
from jax.experimental.pallas import tpu as pltpu

K = 501      # kernel_size[0]
PAD = 250    # padding[0]


def _reflect_count_matrix(T):
    """Static (T, T) count matrix M[s, t] = #taps of the centered 501-window at output t
    that land on source s after PyTorch 'reflect' padding. Values in {0, 1, 2} -> exact
    in bf16."""
    s = jnp.arange(T, dtype=jnp.int32)[:, None]   # source/time index (contraction dim)
    t = jnp.arange(T, dtype=jnp.int32)[None, :]   # output time index (lanes)
    main = jnp.abs(t - s) <= PAD                          # direct window hit
    left = (s >= 1) & (s <= PAD - t)                      # hit via left-edge reflection
    right = (s <= T - 2) & (s >= 2 * T - 2 - t - PAD)     # hit via right-edge reflection
    m = (main.astype(jnp.float32)
         + left.astype(jnp.float32)
         + right.astype(jnp.float32))
    return m.astype(jnp.bfloat16)                          # (T, T)


def smoother_kernel(bias_ref, x_ref, m_ref, out_ref):
    """One row-tile per grid step.

    bias_ref : SMEM (1,)      -- bias / K  (scalar)
    x_ref    : VMEM (TR, T)   -- input rows (B*F folded), time on lanes
    m_ref    : VMEM (T, T)    -- resident bf16 reflected-band count matrix
    out_ref  : VMEM (TR, T)   -- max(pred, smoothed)
    """
    x = x_ref[...]                                         # (TR, T) f32 (exact, for max)
    win = jnp.dot(x.astype(jnp.bfloat16), m_ref[...],
                  preferred_element_type=jnp.float32)      # (TR, T) window sums on MXU
    smoothed = win * (1.0 / K) + bias_ref[0]
    out_ref[...] = jnp.maximum(x, smoothed).astype(out_ref.dtype)


def _pick_row_tile(R):
    # Prefer MXU-height tiles, but keep >= 2 grid steps when possible (v7x megacore).
    if R % 8 != 0:
        return R  # full-extent block (always legal)
    for tr in (256, 128, 64, 32, 16, 8):
        if R % tr == 0 and R // tr >= 2:
            return tr
    return R


def smoother_forward(pred, bias):
    """pred: (B, T, F) float32, bias: (1,) float32  ->  (B, T, F) float32."""
    B, T, F = pred.shape
    # PyTorch reflect padding requires padding < input size along that dim.
    assert T >= PAD + 1, f"reflect padding needs T >= {PAD + 1}, got T={T}"

    R = B * F
    TR = _pick_row_tile(R)
    num_tiles = R // TR

    # Layout plumbing: time on lanes (last dim), B*F folded onto MXU rows / sublanes.
    x = jnp.transpose(pred, (0, 2, 1)).reshape(R, T)       # (R, T)
    m = _reflect_count_matrix(T)                            # (T, T) bf16, built once
    bias_over_k = (bias / K).astype(jnp.float32)            # fused epilogue scalar

    out_rt = pl.pallas_call(
        smoother_kernel,
        out_shape=jax.ShapeDtypeStruct((R, T), pred.dtype),
        grid=(num_tiles,),
        in_specs=[
            pl.BlockSpec(memory_space=pltpu.SMEM),                 # bias/K scalar
            pl.BlockSpec((TR, T), lambda i: (i, 0)),               # input row tile
            pl.BlockSpec((T, T), lambda i: (0, 0)),                # resident count matrix
        ],
        out_specs=pl.BlockSpec((TR, T), lambda i: (i, 0)),
        compiler_params=pltpu.CompilerParams(
            dimension_semantics=("parallel",)),
        cost_estimate=pl.CostEstimate(
            flops=2 * R * T * T,                     # dense banded matmul (MACs x2)
            transcendentals=0,
            bytes_accessed=2 * R * T * 4 + T * T * 2 + 4,
        ),
    )(bias_over_k, x, m)

    return jnp.transpose(out_rt.reshape(B, F, T), (0, 2, 1))   # back to (B, T, F)


if __name__ == "__main__":
    key = jax.random.PRNGKey(0)
    kp, kb = jax.random.split(key)

    # T must be >= PAD + 1 = 251 for reflect padding to be valid (as in PyTorch).
    B, T, F = 2, 256, 16
    pred = jax.random.normal(kp, (B, T, F), dtype=jnp.float32)

    # Deterministic bias init, matching Conv2d's default U(-1/sqrt(fan_in), 1/sqrt(fan_in)),
    # fan_in = 1 * 501 * 1.  (Weight is all-ones, folded into the window-count matrix.)
    bound = 1.0 / (float(K) ** 0.5)
    bias = jax.random.uniform(kb, (1,), minval=-bound, maxval=bound, dtype=jnp.float32)

    out = jax.block_until_ready(smoother_forward(pred, bias))

    # Pure-JAX reference (reflect pad + cumsum moving average) for a sanity check.
    padded = jnp.pad(pred, ((0, 0), (PAD, PAD), (0, 0)), mode="reflect")
    csum = jnp.cumsum(jnp.pad(padded, ((0, 0), (1, 0), (0, 0))), axis=1)
    win = csum[:, K:, :] - csum[:, :-K, :]
    ref = jnp.maximum(pred, (win + bias[0]) / K)

    assert out.shape == (B, T, F) and out.dtype == jnp.float32
    assert jnp.allclose(out, ref, atol=1e-3, rtol=1e-4), float(jnp.max(jnp.abs(out - ref)))
    print("KERNEL_OK")
</pallas_src>

<mosaic_0001>
module attributes {stable_mosaic.version = 11 : i64} {
  func.func @smoother_kernel(%arg0: i32, %arg1: memref<1xf32, #tpu.memory_space<smem>>, %arg2: memref<16x256xf32, #tpu.memory_space<vmem>>, %arg3: memref<256x256xbf16, #tpu.memory_space<vmem>>, %arg4: memref<16x256xf32, #tpu.memory_space<vmem>>) attributes {dimension_semantics = [#tpu.dimension_semantics<parallel>], iteration_bounds = array<i64: 2>, scalar_prefetch = 0 : i64, scratch_operands = 0 : i64, tpu.core_type = #tpu.core_type<tc>, window_params = [{transform_indices = @transform_0, window_bounds = array<i64: 1>}, {transform_indices = @transform_1, window_bounds = array<i64: 16, 256>}, {pipeline_mode = #tpu.pipeline_mode<synchronous>, transform_indices = @transform_2, window_bounds = array<i64: 256, 256>}, {transform_indices = @transform_3, window_bounds = array<i64: 16, 256>}]} {
    %c0 = arith.constant 0 : index
    %c0_0 = arith.constant 0 : index
    %0 = vector.load %arg2[%c0, %c0_0] : memref<16x256xf32, #tpu.memory_space<vmem>>, vector<16x256xf32>
    %1 = arith.truncf %0 : vector<16x256xf32> to vector<16x256xbf16>
    %c0_1 = arith.constant 0 : index
    %c0_2 = arith.constant 0 : index
    %2 = vector.load %arg3[%c0_1, %c0_2] : memref<256x256xbf16, #tpu.memory_space<vmem>>, vector<256x256xbf16>
    %cst = arith.constant dense<0.000000e+00> : vector<16x256xf32>
    %3 = tpu.matmul %1, %2, %cst {dimension_numbers = #tpu.dot_dimension_numbers<[1], [0], [0], [1], [0, 0, 1, 1], [], []>} : vector<16x256xbf16>, vector<256x256xbf16>, vector<16x256xf32> -> vector<16x256xf32>
    %cst_3 = arith.constant 0.00199600798 : f32
    %4 = vector.broadcast %cst_3 : f32 to vector<16x256xf32>
    %5 = arith.mulf %3, %4 : vector<16x256xf32>
    %c0_4 = arith.constant 0 : index
    %6 = memref.load %arg1[%c0_4] : memref<1xf32, #tpu.memory_space<smem>>
    %7 = vector.broadcast %6 : f32 to vector<16x256xf32>
    %8 = arith.addf %5, %7 : vector<16x256xf32>
    %9 = arith.maximumf %0, %8 : vector<16x256xf32>
    %c0_5 = arith.constant 0 : index
    %c0_6 = arith.constant 0 : index
    %10 = vector.load %arg4[%c0_5, %c0_6] : memref<16x256xf32, #tpu.memory_space<vmem>>, vector<16x256xf32>
    tpu.vector_store %arg4[%c0_5, %c0_6], %9 {strides = array<i32>} : memref<16x256xf32, #tpu.memory_space<vmem>>, vector<16x256xf32>,
    return
  }
  func.func @transform_0(%arg0: i32) -> i32 {
    %c0_i32 = arith.constant 0 : i32
    %c0_i32_0 = arith.constant 0 : i32
    return %c0_i32 : i32
  }
  func.func @transform_1(%arg0: i32) -> (i32, i32) {
    %c0_i32 = arith.constant 0 : i32
    %c0_i32_0 = arith.constant 0 : i32
    return %arg0, %c0_i32 : i32, i32
  }
  func.func @transform_2(%arg0: i32) -> (i32, i32) {
    %c0_i32 = arith.constant 0 : i32
    %c0_i32_0 = arith.constant 0 : i32
    %c0_i32_1 = arith.constant 0 : i32
    return %c0_i32, %c0_i32_0 : i32, i32
  }
  func.func @transform_3(%arg0: i32) -> (i32, i32) {
    %c0_i32 = arith.constant 0 : i32
    %c0_i32_0 = arith.constant 0 : i32
    return %arg0, %c0_i32 : i32, i32
  }
}

</mosaic_0001>

<llo_original>
// kernel: tpu_custom_call.1
$region0: #{tpu_custom_call.1}
  #allocation0 [shape = 'u32[]', space=smem, size = 0x4, offset = 0x4, fixed_abs, tag = 'smem constant byte address 0x4 - core index']
  #allocation1 [shape = 'u32[144,128]{1,0:T(1,128)}', space=vmem, size = 0x12000, scoped, tag = 'internal scratch']
  #allocation2 [shape = 'f32[1]{0:T(128)S(6)}', space=smem, size = 0x200, scoped, tag = 'scoped memory for tpu_custom_call.1']
  %s0 = inlined_call_operand.<no memory space> [shape: f32[1], index: 0, kind: input, shape index: {}]
  %s1 = inlined_call_operand.hbm [shape: f32[32,256], index: 1, kind: input, shape index: {}]
  %s2 = inlined_call_operand.hbm [shape: bf16[256,256], index: 2, kind: input, shape index: {}]
  %s3 = inlined_call_operand.hbm [shape: f32[32,256], index: 3, kind: output, shape index: {}]
  %s4 = sld [smem:[#allocation0]]
  $region53: #{tpu_custom_call.1} parent=0
    _
  %s6 = ssub.s32 1, %s4
  %s7 = scalar_select 0, %s6, %s4
  %8 = sst [smem:[#allocation2]] %s0
  $region1: #{tpu_custom_call.1} parent=0
    #allocation3 [shape = 'u8[32768]{0}', space=vmem, size = 0x8000, scoped, tag = 'input window, operand 1']
    #allocation4 [shape = 's32[2]{0}', space=sflag, size = 0x8, scoped, tag = 'scoped memory for tpu_custom_call.1']
    #allocation5 [shape = 's32[2]{0}', space=sflag, size = 0x8, scoped, tag = 'scoped memory for tpu_custom_call.1']
    #allocation6 [shape = 'u8[131072]{0}', space=vmem, size = 0x20000, scoped, tag = 'input window, operand 2, single buffered']
    #allocation7 [shape = 's32[1]{0}', space=sflag, size = 0x4, scoped, tag = 'scoped memory for tpu_custom_call.1']
    #allocation8 [shape = 'u8[32768]{0}', space=vmem, size = 0x8000, scoped, tag = 'output window, operand 0']
    %9 = vsyncpa [#allocation4], 0
    %s10 = scalar_lea.sflag [#allocation4], 1
    %11 = vsyncpa %s10, 0
    %12 = vsyncpa [#allocation7], 0
    %13 = vsyncpa [#allocation5], 0
    %s14 = scalar_lea.sflag [#allocation5], 1
    %15 = vsyncpa %s14, 0
    loop: start=0, step=1, limit=4
    $region2: #{tpu_custom_call.1} parent=1 // loop_pre_header
      _
    $region3: #{tpu_custom_call.1} parent=1 // loop_header
      %s17 = sphi 0, %s21
      %p18 = scmp.ge.s32.totalorder %s17, 4
      %s25 = sphi 0, %s25
      %s27 = sphi 0, %s25
      %s28 = sphi 0, %s27
      %s42 = sphi 0, %s28
      %s48 = sphi 0, %s50
      %s51 = sphi 0, %s48
      %s52 = sphi 0, %s51
      %s68 = sphi 0, %s52
      %s72 = sphi 0, %s72
      %s74 = sphi 0, %s72
      %s75 = sphi 0, %s74
      %s89 = sphi 0, %s75
      %s95 = sphi 0, %s97
      %s98 = sphi 0, %s95
      %s99 = sphi 0, %s98
      %s115 = sphi 0, %s99
    $region4: #{tpu_custom_call.1} parent=1 // loop_header_branch
      %20 = sbr.rel (%p18) target = $region8
    $region5: #{tpu_custom_call.1} parent=1 // loop_body
      %s22 = ssub.s32 %s17, 1
      %s23 = ssub.s32 %s17, 2
      %s24 = sadd.s32 %s17, 1
      %s26 = sadd.s32 %s25, 1
      %p29 = scmp.eq.s32.totalorder %s17, 1
      %p30 = scmp.ne.s32.totalorder %s25, %s27
      %p31 = scmp.eq.s32.totalorder %s17, 0
      %p32 = por %p30, %p31
      %p33 = scmp.ne.s32.totalorder %s25, %s27
      %p34 = scmp.eq.s32.totalorder %s22, 1
      %p35 = por %p33, %p34
      %p36 = scmp.ne.s32.totalorder %s27, %s28
      %p37 = scmp.eq.s32.totalorder %s22, 0
      %p38 = por %p36, %p37
      %p39 = scmp.ne.s32.totalorder %s27, %s28
      %p40 = scmp.eq.s32.totalorder %s23, 1
      %p41 = por %p39, %p40
      %p43 = scmp.ne.s32.totalorder %s28, %s42
      %p44 = scmp.eq.s32.totalorder %s23, 0
      %p45 = por %p43, %p44
      %s46 = ssub.s32 %s17, %s24
      %p47 = scmp.eq.s32.totalorder %s46, 0
      %s49 = sadd.s32 %s48, 1
      %s50 = scalar_select %p47, %s48, %s49
      %p53 = pneg %p47
      %p54 = scmp.eq.s32.totalorder %s17, 1
      %p55 = por %p53, %p54
      %p56 = scmp.ne.s32.totalorder %s48, %s51
      %p57 = scmp.eq.s32.totalorder %s17, 0
      %p58 = por %p56, %p57
      %p59 = scmp.ne.s32.totalorder %s48, %s51
      %p60 = scmp.eq.s32.totalorder %s22, 1
      %p61 = por %p59, %p60
      %p62 = scmp.ne.s32.totalorder %s51, %s52
      %p63 = scmp.eq.s32.totalorder %s22, 0
      %p64 = por %p62, %p63
      %p65 = scmp.ne.s32.totalorder %s51, %s52
      %p66 = scmp.eq.s32.totalorder %s23, 1
      %p67 = por %p65, %p66
      %p69 = scmp.ne.s32.totalorder %s52, %s68
      %p70 = scmp.eq.s32.totalorder %s23, 0
      %p71 = por %p69, %p70
      %s73 = sadd.s32 %s72, 1
      %p76 = scmp.eq.s32.totalorder %s17, 1
      %p77 = scmp.ne.s32.totalorder %s72, %s74
      %p78 = scmp.eq.s32.totalorder %s17, 0
      %p79 = por %p77, %p78
      %p80 = scmp.ne.s32.totalorder %s72, %s74
      %p81 = scmp.eq.s32.totalorder %s22, 1
      %p82 = por %p80, %p81
      %p83 = scmp.ne.s32.totalorder %s74, %s75
      %p84 = scmp.eq.s32.totalorder %s22, 0
      %p85 = por %p83, %p84
      %p86 = scmp.ne.s32.totalorder %s74, %s75
      %p87 = scmp.eq.s32.totalorder %s23, 1
      %p88 = por %p86, %p87
      %p90 = scmp.ne.s32.totalorder %s75, %s89
      %p91 = scmp.eq.s32.totalorder %s23, 0
      %p92 = por %p90, %p91
      %s93 = ssub.s32 %s17, %s24
      %p94 = scmp.eq.s32.totalorder %s93, 0
      %s96 = sadd.s32 %s95, 1
      %s97 = scalar_select %p94, %s95, %s96
      %p100 = pneg %p94
      %p101 = scmp.eq.s32.totalorder %s17, 1
      %p102 = por %p100, %p101
      %p103 = scmp.ne.s32.totalorder %s95, %s98
      %p104 = scmp.eq.s32.totalorder %s17, 0
      %p105 = por %p103, %p104
      %p106 = scmp.ne.s32.totalorder %s95, %s98
      %p107 = scmp.eq.s32.totalorder %s22, 1
      %p108 = por %p106, %p107
      %p109 = scmp.ne.s32.totalorder %s98, %s99
      %p110 = scmp.eq.s32.totalorder %s22, 0
      %p111 = por %p109, %p110
      %p112 = scmp.ne.s32.totalorder %s98, %s99
      %p113 = scmp.eq.s32.totalorder %s23, 1
      %p114 = por %p112, %p113
      %p116 = scmp.ne.s32.totalorder %s99, %s115
      %p117 = scmp.eq.s32.totalorder %s23, 0
      %p118 = por %p116, %p117
      %p119 = scmp.le.s32.totalorder 1, %s17
      %p120 = scmp.lt.s32.totalorder %s17, 3
      %p121 = pnand %p119, %p120
      %p122 = pneg %p121
      // Predicated region
      $region9: #{tpu_custom_call.1} parent=5 // pred_check
        _
      $region10: #{tpu_custom_call.1} parent=5 // pred_check_branch
        %124 = sbr.rel (%p121) target = $region12
      $region11: #{tpu_custom_call.1} parent=5 // pred_region
        %s125 = ssub.s32 %s17, 1
        // Predicated region
        $region13: #{tpu_custom_call.1} parent=11 // pred_check
          %p126 = pneg %p38
        $region14: #{tpu_custom_call.1} parent=11 // pred_check_branch
          %128 = sbr.rel (%p126) target = $region16
        $region15: #{tpu_custom_call.1} parent=11 // pred_region
          _
        $region16: #{tpu_custom_call.1} parent=11 // pred_fallthru
          _
        // Predicated region
        $region17: #{tpu_custom_call.1} parent=11 // pred_check
          %p129 = pneg %p85
        $region18: #{tpu_custom_call.1} parent=11 // pred_check_branch
          %131 = sbr.rel (%p129) target = $region20
        $region19: #{tpu_custom_call.1} parent=11 // pred_region
          %s133 = ssub.s32 4096, 4096
          %134 = vsyncadd [#allocation7], %s133
          %s135 = sshll.u32 [#allocation6], 4
          %s136 = int_to_ptr.vmem [resolvable:$true] %s135
          %141 = dma.hbm_to_vmem [thread:$0]  %s2, 4096, %s136, [#allocation7], 128, 128, 8
        $region20: #{tpu_custom_call.1} parent=11 // pred_fallthru
          _
      $region12: #{tpu_custom_call.1} parent=5 // pred_fallthru
        _
      %p142 = scmp.lt.s32.totalorder %s17, 2
      // Predicated region
      $region21: #{tpu_custom_call.1} parent=5 // pred_check
        %p143 = pneg %p142
      $region22: #{tpu_custom_call.1} parent=5 // pred_check_branch
        %145 = sbr.rel (%p143) target = $region24
      $region23: #{tpu_custom_call.1} parent=5 // pred_region
        // Predicated region
        $region25: #{tpu_custom_call.1} parent=23 // pred_check
          %p146 = pneg %p58
        $region26: #{tpu_custom_call.1} parent=23 // pred_check_branch
          %148 = sbr.rel (%p146) target = $region28
        $region27: #{tpu_custom_call.1} parent=23 // pred_region
          %s149 = sand.u32 %s48, 1
          %s150 = scalar_lea.sflag [#allocation4], %s149
          %s151 = sand.u32 %s48, 1
          %s152 = smul.addr %s151, 32
          %s153 = scalar_lea.vmem [#allocation3], %s152
          %s154 = smul.u32 2, %s17
          %s156 = ssub.s32 512, 512
          %157 = vsyncadd %s150, %s156
          %s158 = smul.addr %s154, 2
          %s159 = smul.addr %s158, 128
          %s160 = scalar_lea.hbm %s1, %s159
          %s161 = sshll.u32 %s153, 4
          %s162 = int_to_ptr.vmem [resolvable:$true] %s161
          %167 = dma.hbm_to_vmem [thread:$0]  %s160, 512, %s162, %s150, 256, 256, 16
        $region28: #{tpu_custom_call.1} parent=23 // pred_fallthru
          _
      $region24: #{tpu_custom_call.1} parent=5 // pred_fallthru
        _
      %p168 = scmp.le.s32.totalorder 1, %s17
      %p169 = scmp.lt.s32.totalorder %s17, 3
      %p170 = pnand %p168, %p169
      %p171 = pneg %p170
      // Predicated region
      $region29: #{tpu_custom_call.1} parent=5 // pred_check
        _
      $region30: #{tpu_custom_call.1} parent=5 // pred_check_branch
        %173 = sbr.rel (%p170) target = $region32
      $region31: #{tpu_custom_call.1} parent=5 // pred_region
        %s174 = ssub.s32 %s17, 1
        %s175 = sand.u32 %s51, 1
        %s176 = scalar_lea.sflag [#allocation4], %s175
        %s177 = sand.u32 %s51, 1
        %s178 = smul.addr %s177, 32
        %s179 = scalar_lea.vmem [#allocation3], %s178
        // Predicated region
        $region33: #{tpu_custom_call.1} parent=31 // pred_check
          %p180 = pneg %p64
        $region34: #{tpu_custom_call.1} parent=31 // pred_check_branch
          %182 = sbr.rel (%p180) target = $region36
        $region35: #{tpu_custom_call.1} parent=31 // pred_region
          %183 = dma.done %s176, 512
        $region36: #{tpu_custom_call.1} parent=31 // pred_fallthru
          _
        // Predicated region
        $region37: #{tpu_custom_call.1} parent=31 // pred_check
          %p184 = pneg %p85
        $region38: #{tpu_custom_call.1} parent=31 // pred_check_branch
          %186 = sbr.rel (%p184) target = $region40
        $region39: #{tpu_custom_call.1} parent=31 // pred_region
          %187 = dma.done [#allocation7], 4096
        $region40: #{tpu_custom_call.1} parent=31 // pred_fallthru
          _
        %p188 = pneg %p38
        %p189 = pneg %p35
        %s190 = sand.u32 %s51, 1
        %s191 = scalar_lea.sflag [#allocation4], %s190
        %s192 = sand.u32 %s51, 1
        %s193 = smul.addr %s192, 32
        %s194 = scalar_lea.vmem [#allocation3], %s193
        %p195 = pneg %p64
        %p196 = pneg %p61
        %p197 = pneg %p85
        %p198 = pneg %p82
        %p199 = pneg %p111
        %p200 = pneg %p108
        %s201 = sand.u32 %s98, 1
        %s202 = scalar_lea.sflag [#allocation5], %s201
        %s203 = sand.u32 %s98, 1
        %s204 = smul.addr %s203, 32
        %s205 = scalar_lea.vmem [#allocation8], %s204
        %s206 = smul.u32 2, %s22
        %s207 = smul.u32 2, %s22
        %v208 = vld [vmem:[%s179] sm:$0xff]
        %v209 = vld [vmem:[%s179 + $0x8] sm:$0xff]
        %v210 = vld [vmem:[%s179 + $0x10] sm:$0xff]
        %v211 = vld [vmem:[%s179 + $0x18] sm:$0xff]
        %v212 = vpack.c.bf16 %v210, %v208
        %v213 = vpack.c.bf16 %v211, %v209
        %v214 = vld [vmem:[#allocation6] sm:$0xff]
        %v215 = vld [vmem:[#allocation6 + $0x8] sm:$0xff]
        %v216 = vld [vmem:[#allocation6 + $0x10] sm:$0xff]
        %v217 = vld [vmem:[#allocation6 + $0x18] sm:$0xff]
        %v218 = vld [vmem:[#allocation6 + $0x20] sm:$0xff]
        %v219 = vld [vmem:[#allocation6 + $0x28] sm:$0xff]
        %v220 = vld [vmem:[#allocation6 + $0x30] sm:$0xff]
        %v221 = vld [vmem:[#allocation6 + $0x38] sm:$0xff]
        %v222 = vld [vmem:[#allocation6 + $0x40] sm:$0xff]
        %v223 = vld [vmem:[#allocation6 + $0x48] sm:$0xff]
        %v224 = vld [vmem:[#allocation6 + $0x50] sm:$0xff]
        %v225 = vld [vmem:[#allocation6 + $0x58] sm:$0xff]
        %v226 = vld [vmem:[#allocation6 + $0x60] sm:$0xff]
        %v227 = vld [vmem:[#allocation6 + $0x68] sm:$0xff]
        %v228 = vld [vmem:[#allocation6 + $0x70] sm:$0xff]
        %v229 = vld [vmem:[#allocation6 + $0x78] sm:$0xff]
        %v230 = vld [vmem:[#allocation6 + $0x80] sm:$0xff]
        %v231 = vld [vmem:[#allocation6 + $0x88] sm:$0xff]
        %v232 = vld [vmem:[#allocation6 + $0x90] sm:$0xff]
        %v233 = vld [vmem:[#allocation6 + $0x98] sm:$0xff]
        %v234 = vld [vmem:[#allocation6 + $0xa0] sm:$0xff]
        %v235 = vld [vmem:[#allocation6 + $0xa8] sm:$0xff]
        %v236 = vld [vmem:[#allocation6 + $0xb0] sm:$0xff]
        %v237 = vld [vmem:[#allocation6 + $0xb8] sm:$0xff]
        %v238 = vld [vmem:[#allocation6 + $0xc0] sm:$0xff]
        %v239 = vld [vmem:[#allocation6 + $0xc8] sm:$0xff]
        %v240 = vld [vmem:[#allocation6 + $0xd0] sm:$0xff]
        %v241 = vld [vmem:[#allocation6 + $0xd8] sm:$0xff]
        %v242 = vld [vmem:[#allocation6 + $0xe0] sm:$0xff]
        %v243 = vld [vmem:[#allocation6 + $0xe8] sm:$0xff]
        %v244 = vld [vmem:[#allocation6 + $0xf0] sm:$0xff]
        %v245 = vld [vmem:[#allocation6 + $0xf8] sm:$0xff]
        %v278 = vunpack.c.l.b16 %v214
        %v279 = vunpack.c.h.b16 %v214
        %v280 = vunpack.c.l.b16 %v215
        %v281 = vunpack.c.h.b16 %v215
        %v282 = vunpack.c.l.b16 %v216
        %v283 = vunpack.c.h.b16 %v216
        %v284 = vunpack.c.l.b16 %v217
        %v285 = vunpack.c.h.b16 %v217
        %v286 = vunpack.c.l.b16 %v218
        %v287 = vunpack.c.h.b16 %v218
        %v288 = vunpack.c.l.b16 %v219
        %v289 = vunpack.c.h.b16 %v219
        %v290 = vunpack.c.l.b16 %v220
        %v291 = vunpack.c.h.b16 %v220
        %v292 = vunpack.c.l.b16 %v221
        %v293 = vunpack.c.h.b16 %v221
        %v294 = vunpack.c.l.b16 %v222
        %v295 = vunpack.c.h.b16 %v222
        %v296 = vunpack.c.l.b16 %v223
        %v297 = vunpack.c.h.b16 %v223
        %v298 = vunpack.c.l.b16 %v224
        %v299 = vunpack.c.h.b16 %v224
        %v300 = vunpack.c.l.b16 %v225
        %v301 = vunpack.c.h.b16 %v225
        %v302 = vunpack.c.l.b16 %v226
        %v303 = vunpack.c.h.b16 %v226
        %v304 = vunpack.c.l.b16 %v227
        %v305 = vunpack.c.h.b16 %v227
        %v306 = vunpack.c.l.b16 %v228
        %v307 = vunpack.c.h.b16 %v228
        %v308 = vunpack.c.l.b16 %v229
        %v309 = vunpack.c.h.b16 %v229
        %v310 = vunpack.c.l.b16 %v230
        %v311 = vunpack.c.h.b16 %v230
        %v312 = vunpack.c.l.b16 %v231
        %v313 = vunpack.c.h.b16 %v231
        %v314 = vunpack.c.l.b16 %v232
        %v315 = vunpack.c.h.b16 %v232
        %v316 = vunpack.c.l.b16 %v233
        %v317 = vunpack.c.h.b16 %v233
        %v318 = vunpack.c.l.b16 %v234
        %v319 = vunpack.c.h.b16 %v234
        %v320 = vunpack.c.l.b16 %v235
        %v321 = vunpack.c.h.b16 %v235
        %v322 = vunpack.c.l.b16 %v236
        %v323 = vunpack.c.h.b16 %v236
        %v324 = vunpack.c.l.b16 %v237
        %v325 = vunpack.c.h.b16 %v237
        %v326 = vunpack.c.l.b16 %v238
        %v327 = vunpack.c.h.b16 %v238
        %v328 = vunpack.c.l.b16 %v239
        %v329 = vunpack.c.h.b16 %v239
        %v330 = vunpack.c.l.b16 %v240
        %v331 = vunpack.c.h.b16 %v240
        %v332 = vunpack.c.l.b16 %v241
        %v333 = vunpack.c.h.b16 %v241
        %v334 = vunpack.c.l.b16 %v242
        %v335 = vunpack.c.h.b16 %v242
        %v336 = vunpack.c.l.b16 %v243
        %v337 = vunpack.c.h.b16 %v243
        %v338 = vunpack.c.l.b16 %v244
        %v339 = vunpack.c.h.b16 %v244
        %v340 = vunpack.c.l.b16 %v245
        %v341 = vunpack.c.h.b16 %v245
        %v342 = vpack.c.b16 %v280, %v278
        %v343 = vpack.c.b16 %v281, %v279
        %v344 = vpack.c.b16 %v284, %v282
        %v345 = vpack.c.b16 %v285, %v283
        %v346 = vpack.c.b16 %v288, %v286
        %v347 = vpack.c.b16 %v289, %v287
        %v348 = vpack.c.b16 %v292, %v290
        %v349 = vpack.c.b16 %v293, %v291
        %v350 = vpack.c.b16 %v296, %v294
        %v351 = vpack.c.b16 %v297, %v295
        %v352 = vpack.c.b16 %v300, %v298
        %v353 = vpack.c.b16 %v301, %v299
        %v354 = vpack.c.b16 %v304, %v302
        %v355 = vpack.c.b16 %v305, %v303
        %v356 = vpack.c.b16 %v308, %v306
        %v357 = vpack.c.b16 %v309, %v307
        %v358 = vpack.c.b16 %v312, %v310
        %v359 = vpack.c.b16 %v313, %v311
        %v360 = vpack.c.b16 %v316, %v314
        %v361 = vpack.c.b16 %v317, %v315
        %v362 = vpack.c.b16 %v320, %v318
        %v363 = vpack.c.b16 %v321, %v319
        %v364 = vpack.c.b16 %v324, %v322
        %v365 = vpack.c.b16 %v325, %v323
        %v366 = vpack.c.b16 %v328, %v326
        %v367 = vpack.c.b16 %v329, %v327
        %v368 = vpack.c.b16 %v332, %v330
        %v369 = vpack.c.b16 %v333, %v331
        %v370 = vpack.c.b16 %v336, %v334
        %v371 = vpack.c.b16 %v337, %v335
        %v372 = vpack.c.b16 %v340, %v338
        %v373 = vpack.c.b16 %v341, %v339
        %406 = vmatprep.subr.bf16.mxu0 %v357
        %407 = vmatpush1.bf16.msra.mxu0 %v356
        %408 = vmatprep.subr.bf16.mxu0 %v355
        %409 = vmatpush1.bf16.msra.mxu0 %v354
        %410 = vmatprep.subr.bf16.mxu0 %v353
        %411 = vmatpush1.bf16.msra.mxu0 %v352
        %412 = vmatprep.subr.bf16.mxu0 %v351
        %413 = vmatpush1.bf16.msra.mxu0 %v350
        %414 = vmatprep.subr.bf16.mxu0 %v349
        %415 = vmatpush1.bf16.msra.mxu0 %v348
        %416 = vmatprep.subr.bf16.mxu0 %v347
        %417 = vmatpush1.bf16.msra.mxu0 %v346
        %418 = vmatprep.subr.bf16.mxu0 %v345
        %419 = vmatpush1.bf16.msra.mxu0 %v344
        %420 = vmatprep.subr.bf16.mxu0 %v343
        %421 = vmatpush1.bf16.msra.mxu0 %v342
        %422 = vmatprep.subr.bf16.mxu0 %v373
        %423 = vmatpush2.bf16.msra.mxu0 %v372
        %424 = vmatprep.subr.bf16.mxu0 %v371
        %425 = vmatpush2.bf16.msra.mxu0 %v370
        %426 = vmatprep.subr.bf16.mxu0 %v369
        %427 = vmatpush2.bf16.msra.mxu0 %v368
        %428 = vmatprep.subr.bf16.mxu0 %v367
        %429 = vmatpush2.bf16.msra.mxu0 %v366
        %430 = vmatprep.subr.bf16.mxu0 %v365
        %431 = vmatpush2.bf16.msra.mxu0 %v364
        %432 = vmatprep.subr.bf16.mxu0 %v363
        %433 = vmatpush2.bf16.msra.mxu0 %v362
        %434 = vmatprep.subr.bf16.mxu0 %v361
        %435 = vmatpush2.bf16.msra.mxu0 %v360
        %436 = vmatprep.subr.bf16.mxu0 %v359
        %437 = vmatpush2.bf16.msra.mxu0 %v358
        %438 = vmatprep.mubr.bf16.mxu0 %v213
        %439 = vmatmul.mubr.bf16.gmra.mxu0 %v212
        %v440 = vpop.f32.mrf.mxu0
        %v441 = vadd.f32 0.0, %v440
        %v442 = vpop.f32.mrf.mxu0
        %v443 = vadd.f32 0.0, %v442
        %v444 = vpop.f32.mrf.mxu0
        %v445 = vadd.f32 0.0, %v444
        %v446 = vpop.f32.mrf.mxu0
        %v447 = vadd.f32 0.0, %v446
        %448 = vdwg.mxu0
        %v449 = vmul.f32 %v441, 0.001996008
        %v450 = vmul.f32 %v443, 0.001996008
        %v451 = vmul.f32 %v445, 0.001996008
        %v452 = vmul.f32 %v447, 0.001996008
        %s453 = sld [smem:[#allocation2]]
        %v454 = vstv %s453
        %v455 = vadd.f32 %v449, %v454
        %v456 = vadd.f32 %v450, %v454
        %v457 = vadd.f32 %v451, %v454
        %v458 = vadd.f32 %v452, %v454
        %v459 = vmax.f32 %v208, %v455
        %v460 = vmax.f32 %v209, %v456
        %v461 = vmax.f32 %v210, %v457
        %v462 = vmax.f32 %v211, %v458
        %463 = vst [vmem:[%s205] sm:$0xff] %v459
        %464 = vst [vmem:[%s205 + $0x8] sm:$0xff] %v460
        %465 = vst [vmem:[%s205 + $0x10] sm:$0xff] %v461
        %466 = vst [vmem:[%s205 + $0x18] sm:$0xff] %v462
        %s467 = sand.u32 %s98, 1
        %s468 = scalar_lea.sflag [#allocation5], %s467
        %s469 = sand.u32 %s98, 1
        %s470 = smul.addr %s469, 32
        %s471 = scalar_lea.vmem [#allocation8], %s470
        // Predicated region
        $region41: #{tpu_custom_call.1} parent=31 // pred_check
          %p472 = pneg %p108
        $region42: #{tpu_custom_call.1} parent=31 // pred_check_branch
          %474 = sbr.rel (%p472) target = $region44
        $region43: #{tpu_custom_call.1} parent=31 // pred_region
          %s475 = smul.u32 2, %s22
          %s477 = ssub.s32 512, 512
          %478 = vsyncadd %s468, %s477
          %s479 = smul.addr %s475, 2
          %s480 = smul.addr %s479, 128
          %s481 = scalar_lea.hbm %s3, %s480
          %s482 = sshll.u32 %s471, 4
          %s483 = int_to_ptr.vmem [resolvable:$true] %s482
          %488 = dma.vmem_to_hbm [thread:$0]  %s483, 512, %s481, %s468, 256, 256, 16
        $region44: #{tpu_custom_call.1} parent=31 // pred_fallthru
          _
      $region32: #{tpu_custom_call.1} parent=5 // pred_fallthru
        _
      %p489 = scmp.le.s32.totalorder 2, %s17
      // Predicated region
      $region45: #{tpu_custom_call.1} parent=5 // pred_check
        %p490 = pneg %p489
      $region46: #{tpu_custom_call.1} parent=5 // pred_check_branch
        %492 = sbr.rel (%p490) target = $region48
      $region47: #{tpu_custom_call.1} parent=5 // pred_region
        %s493 = ssub.s32 %s17, 2
        // Predicated region
        $region49: #{tpu_custom_call.1} parent=47 // pred_check
          %p494 = pneg %p114
        $region50: #{tpu_custom_call.1} parent=47 // pred_check_branch
          %496 = sbr.rel (%p494) target = $region52
        $region51: #{tpu_custom_call.1} parent=47 // pred_region
          %s497 = sand.u32 %s99, 1
          %s498 = scalar_lea.sflag [#allocation5], %s497
          %s499 = sand.u32 %s99, 1
          %s500 = smul.addr %s499, 32
          %s501 = scalar_lea.vmem [#allocation8], %s500
          %502 = dma.done %s498, 512
        $region52: #{tpu_custom_call.1} parent=47 // pred_fallthru
          _
      $region48: #{tpu_custom_call.1} parent=5 // pred_fallthru
        _
    $region6: #{tpu_custom_call.1} parent=1 // loop_footer
      %s21 = sadd.s32 1, %s17
    $region7: #{tpu_custom_call.1} parent=1 // loop_footer_branch
      %16 = sbr.rel target = $region3
    $region8: #{tpu_custom_call.1} parent=1 // loop_exit
      _
    %503 = vsyncpa [#allocation4], 1
    %s504 = scalar_lea.sflag [#allocation4], 1
    %505 = vsyncpa %s504, 1
    %506 = vsyncpa [#allocation7], 1
    %507 = vsyncpa [#allocation5], 1
    %s508 = scalar_lea.sflag [#allocation5], 1
    %509 = vsyncpa %s508, 1

</llo_original>
